<compile_context>
chip_gen: v5e
topology: v5e:2x2
jax: 0.10.0
libtpu: 0.0.40
codegen_flags: <defaults>
</compile_context>

<pallas_src>
import jax
import jax.numpy as jnp
from jax.experimental import pallas as pl
from jax.experimental.pallas import tpu as pltpu

EPS = 1e-5  # PyTorch BatchNorm1d default eps


# ---------------------------------------------------------------------------
# Kernel
# ---------------------------------------------------------------------------
def _fused_kernel(x_ref, sel_ref, w0_ref, w1_ref, w2_ref, b_ref, o_ref, acc_ref):
    """x_ref:  (B*C, THW) tile of the flattened input
       sel_ref:(B, B*C)   constant batch-selection matrix
       w0_ref: (B*C, CE)  w0 folded with BN0 and 1/(H*W), tiled over batch rows
       w1_ref: (CE, CE)   w1 folded with BN1
       w2_ref: (CE, C)    last_fc weight
       b_ref:  (3, CE)    packed biases [b0', b1', b2 (zero-padded)]
       o_ref:  (B, C)     output
       acc_ref:(B*C, 1)   persistent VMEM accumulator of raw HW sums
    """
    k = pl.program_id(0)

    @pl.when(k == 0)
    def _init():
        acc_ref[...] = jnp.zeros_like(acc_ref)

    # Memory-bound phase: accumulate per-(b, c) sums over this HW tile.
    x = x_ref[...].astype(jnp.float32)                       # cast per-tile in VMEM
    acc_ref[...] += jnp.sum(x, axis=-1, keepdims=True)       # (B*C, 1)

    @pl.when(k == pl.num_programs(0) - 1)
    def _finalize():
        s = acc_ref[...]                                      # (B*C, 1) raw sums
        # pooled @ W0' (+ un-flatten) fused into one matmul:
        #   sel (B, B*C) @ (s * w0_tiled) (B*C, CE)  ==  mean(x) @ (w0 * bn0_scale)
        h = jnp.dot(sel_ref[...], s * w0_ref[...],
                    preferred_element_type=jnp.float32) + b_ref[0:1, :]
        h = jnp.maximum(h, 0.0)

        h = jnp.dot(h, w1_ref[...],
                    preferred_element_type=jnp.float32) + b_ref[1:2, :]
        h = jnp.maximum(h, 0.0)

        c_out = o_ref.shape[-1]
        out = jnp.dot(h, w2_ref[...],
                      preferred_element_type=jnp.float32) + b_ref[2:3, :c_out]
        o_ref[...] = out.astype(o_ref.dtype)


# ---------------------------------------------------------------------------
# Parameters (PyTorch-equivalent shapes) and one-time folding
# ---------------------------------------------------------------------------
def init_params(key, channel=10, expansion=2, num_layer=2):
    """Deterministic parameters matching the PyTorch module's shapes.

    Linear weights are stored already transposed to (in_features, out_features)
    so y = x @ W + b  (equivalent to PyTorch y = x @ W_pt.T + b).
    """
    assert num_layer == 2, "kernel is specialized to the default num_layer=2"
    layers = [channel] + [channel * expansion] * num_layer + [channel]  # [10, 20, 20, 10]

    lin = []
    for i in range(len(layers) - 1):
        in_f, out_f = layers[i], layers[i + 1]
        key, kw, kb = jax.random.split(key, 3)
        bound = 1.0 / (in_f ** 0.5)
        w = jax.random.uniform(kw, (in_f, out_f), jnp.float32, -bound, bound)
        b = jax.random.uniform(kb, (1, out_f), jnp.float32, -bound, bound)
        lin.append((w, b))

    def bn(n):
        return (jnp.ones((1, n), jnp.float32),   # gamma
                jnp.zeros((1, n), jnp.float32),  # beta
                jnp.zeros((1, n), jnp.float32),  # running_mean
                jnp.ones((1, n), jnp.float32))   # running_var

    (w0, b0), (w1, b1), (w2, b2) = lin
    g0, be0, m0, v0 = bn(layers[1])
    g1, be1, m1, v1 = bn(layers[2])
    return (w0, b0, g0, be0, m0, v0,
            w1, b1, g1, be1, m1, v1,
            w2, b2)


def fold_params(params, batch, hw):
    """One-time constant folding: BN(eval) into the linears, 1/(H*W) into w0,
    w0 tiled over batch rows, biases packed into a single (3, CE) array,
    plus the constant batch-selection matrix."""
    (w0, b0, g0, be0, m0, v0,
     w1, b1, g1, be1, m1, v1,
     w2, b2) = params

    k0 = g0 * jax.lax.rsqrt(v0 + EPS)
    w0f = w0 * k0                         # (C, CE)
    b0f = (b0 - m0) * k0 + be0            # (1, CE)
    k1 = g1 * jax.lax.rsqrt(v1 + EPS)
    w1f = w1 * k1                         # (CE, CE)
    b1f = (b1 - m1) * k1 + be1            # (1, CE)

    c_in, ce = w0.shape
    c_out = w2.shape[1]
    bc = batch * c_in

    # Tile w0 over batch rows and fold in the 1/(H*W) pooling scale.
    w0t = jnp.tile(w0f, (batch, 1)) * (1.0 / float(hw))        # (B*C, CE)

    # sel[b, r] = 1 iff row r of the flattened (B*C) sums belongs to batch b.
    row_batch = jnp.arange(bc) // c_in
    sel = (jnp.arange(batch)[:, None] == row_batch[None, :]).astype(jnp.float32)  # (B, B*C)

    # Pack biases: [b0', b1', b2 (zero-padded to CE)].
    b2p = jnp.zeros((1, ce), jnp.float32).at[:, :c_out].set(b2)
    bias = jnp.concatenate([b0f, b1f, b2p], axis=0)            # (3, CE)

    return sel, w0t, w1f, w2, bias


# ---------------------------------------------------------------------------
# Wrapper
# ---------------------------------------------------------------------------
def _choose_hw_tile(bc, hw, itemsize, vmem_budget_bytes=16 * 1024 * 1024):
    """Largest multiple-of-128 divisor of hw whose double-buffered (bc, tile)
    block fits the budget; falls back to the full hw (legal: equals array dim)."""
    if hw % 128 != 0:
        return hw
    max_elems = max(128, vmem_budget_bytes // (2 * bc * itemsize))
    t = min((max_elems // 128) * 128, hw)
    while t > 128 and hw % t != 0:
        t -= 128
    return t if (t >= 128 and hw % t == 0) else hw


def channel_attention(x, folded_params):
    """x: (B, C, H, W) NCHW. Returns (B, C, 1, 1), float32."""
    sel, w0t, w1, w2, bias = folded_params
    B, C, H, W = x.shape
    HW = H * W
    BC = B * C
    CE = w1.shape[0]

    x2d = x.reshape(BC, HW)                 # contiguous view; NO dtype cast here
    thw = _choose_hw_tile(BC, HW, x2d.dtype.itemsize)
    grid = (HW // thw,)

    def full_spec(a):
        return pl.BlockSpec(a.shape, lambda k, _nd=a.ndim: (0,) * _nd)

    flops = BC * HW + 2 * B * (BC * CE + CE * CE + CE * C)
    bytes_accessed = (x2d.size * x2d.dtype.itemsize
                      + sum(a.size * a.dtype.itemsize for a in (sel, w0t, w1, w2, bias))
                      + B * C * 4)

    out = pl.pallas_call(
        _fused_kernel,
        out_shape=jax.ShapeDtypeStruct((B, C), jnp.float32),
        grid=grid,
        in_specs=[
            pl.BlockSpec((BC, thw), lambda k: (0, k)),   # streamed HW tiles
            full_spec(sel),
            full_spec(w0t),
            full_spec(w1),
            full_spec(w2),
            full_spec(bias),
        ],
        out_specs=pl.BlockSpec((B, C), lambda k: (0, 0)),   # resident; written at last step
        scratch_shapes=[pltpu.VMEM((BC, 1), jnp.float32)],
        compiler_params=pltpu.CompilerParams(
            dimension_semantics=("arbitrary",),               # reduction axis
            vmem_limit_bytes=32 * 1024 * 1024,
        ),
        cost_estimate=pl.CostEstimate(
            flops=int(flops), transcendentals=0, bytes_accessed=int(bytes_accessed)),
    )(x2d, sel, w0t, w1, w2, bias)

    return out.reshape(B, C, 1, 1)


# ---------------------------------------------------------------------------
# Pure-JAX reference (uses the ORIGINAL, unfolded parameters)
# ---------------------------------------------------------------------------
def _reference(x, params):
    (w0, b0, g0, be0, m0, v0,
     w1, b1, g1, be1, m1, v1,
     w2, b2) = params
    p = jnp.mean(x.astype(jnp.float32), axis=(2, 3))
    h = p @ w0 + b0
    h = (h - m0) * jax.lax.rsqrt(v0 + EPS) * g0 + be0
    h = jnp.maximum(h, 0.0)
    h = h @ w1 + b1
    h = (h - m1) * jax.lax.rsqrt(v1 + EPS) * g1 + be1
    h = jnp.maximum(h, 0.0)
    h = h @ w2 + b2
    return h[:, :, None, None]


if __name__ == "__main__":
    key = jax.random.PRNGKey(0)
    k_x, k_p = jax.random.split(key)

    B, C, H, W = 2, 10, 16, 16
    x = jax.random.normal(k_x, (B, C, H, W), dtype=jnp.float32)

    params = init_params(k_p, channel=C, expansion=2, num_layer=2)
    folded = fold_params(params, batch=B, hw=H * W)   # one-time folding (outside the hot path)

    out = channel_attention(x, folded)
    out = jax.block_until_ready(out)

    ref = _reference(x, params)
    assert out.shape == (B, C, 1, 1)
    assert jnp.allclose(out, ref, atol=1e-4, rtol=1e-4), float(jnp.max(jnp.abs(out - ref)))

    print("KERNEL_OK")
</pallas_src>

<mosaic_0001>
module attributes {stable_mosaic.version = 11 : i64} {
  func.func @_fused_kernel(%arg0: i32, %arg1: memref<20x256xf32, #tpu.memory_space<vmem>>, %arg2: memref<2x20xf32, #tpu.memory_space<vmem>>, %arg3: memref<20x20xf32, #tpu.memory_space<vmem>>, %arg4: memref<20x20xf32, #tpu.memory_space<vmem>>, %arg5: memref<20x10xf32, #tpu.memory_space<vmem>>, %arg6: memref<3x20xf32, #tpu.memory_space<vmem>>, %arg7: memref<2x10xf32, #tpu.memory_space<vmem>>, %arg8: memref<20x1xf32, #tpu.memory_space<vmem>>) attributes {dimension_semantics = [#tpu.dimension_semantics<arbitrary>], iteration_bounds = array<i64: 1>, scalar_prefetch = 0 : i64, scratch_operands = 1 : i64, tpu.core_type = #tpu.core_type<tc>, window_params = [{transform_indices = @transform_0, window_bounds = array<i64: 20, 256>}, {pipeline_mode = #tpu.pipeline_mode<synchronous>, transform_indices = @transform_1, window_bounds = array<i64: 2, 20>}, {pipeline_mode = #tpu.pipeline_mode<synchronous>, transform_indices = @transform_2, window_bounds = array<i64: 20, 20>}, {pipeline_mode = #tpu.pipeline_mode<synchronous>, transform_indices = @transform_3, window_bounds = array<i64: 20, 20>}, {pipeline_mode = #tpu.pipeline_mode<synchronous>, transform_indices = @transform_4, window_bounds = array<i64: 20, 10>}, {pipeline_mode = #tpu.pipeline_mode<synchronous>, transform_indices = @transform_5, window_bounds = array<i64: 3, 20>}, {pipeline_mode = #tpu.pipeline_mode<synchronous>, transform_indices = @transform_6, window_bounds = array<i64: 2, 10>}]} {
    %c0_i32 = arith.constant 0 : i32
    %0 = arith.cmpi eq, %arg0, %c0_i32 : i32
    %1 = arith.extui %0 : i1 to i32
    %c0_i32_0 = arith.constant 0 : i32
    %2 = arith.cmpi ne, %1, %c0_i32_0 : i32
    scf.if %2 {
      %cst_8 = arith.constant 0.000000e+00 : f32
      %12 = vector.broadcast %cst_8 : f32 to vector<20x1xf32>
      %c0_9 = arith.constant 0 : index
      %c0_10 = arith.constant 0 : index
      %13 = vector.load %arg8[%c0_9, %c0_10] : memref<20x1xf32, #tpu.memory_space<vmem>>, vector<20x1xf32>
      tpu.vector_store %arg8[%c0_9, %c0_10], %12 {strides = array<i32>} : memref<20x1xf32, #tpu.memory_space<vmem>>, vector<20x1xf32>,
    } else {
    }
    %c0 = arith.constant 0 : index
    %c0_1 = arith.constant 0 : index
    %3 = vector.load %arg1[%c0, %c0_1] : memref<20x256xf32, #tpu.memory_space<vmem>>, vector<20x256xf32>
    %c0_2 = arith.constant 0 : index
    %c0_3 = arith.constant 0 : index
    %4 = vector.load %arg8[%c0_2, %c0_3] : memref<20x1xf32, #tpu.memory_space<vmem>>, vector<20x1xf32>
    %cst = arith.constant dense<0.000000e+00> : vector<20xf32>
    %5 = vector.multi_reduction <add>, %3, %cst [1] : vector<20x256xf32> to vector<20xf32>
    %6 = vector.shape_cast %5 : vector<20xf32> to vector<20x1xf32>
    %7 = arith.addf %4, %6 : vector<20x1xf32>
    %c0_4 = arith.constant 0 : index
    %c0_5 = arith.constant 0 : index
    %8 = vector.load %arg8[%c0_4, %c0_5] : memref<20x1xf32, #tpu.memory_space<vmem>>, vector<20x1xf32>
    tpu.vector_store %arg8[%c0_4, %c0_5], %7 {strides = array<i32>} : memref<20x1xf32, #tpu.memory_space<vmem>>, vector<20x1xf32>,
    %c0_i32_6 = arith.constant 0 : i32
    %9 = arith.cmpi eq, %arg0, %c0_i32_6 : i32
    %10 = arith.extui %9 : i1 to i32
    %c0_i32_7 = arith.constant 0 : i32
    %11 = arith.cmpi ne, %10, %c0_i32_7 : i32
    scf.if %11 {
      %c0_8 = arith.constant 0 : index
      %c0_9 = arith.constant 0 : index
      %12 = vector.load %arg8[%c0_8, %c0_9] : memref<20x1xf32, #tpu.memory_space<vmem>>, vector<20x1xf32>
      %c0_10 = arith.constant 0 : index
      %c0_11 = arith.constant 0 : index
      %13 = vector.load %arg2[%c0_10, %c0_11] : memref<2x20xf32, #tpu.memory_space<vmem>>, vector<2x20xf32>
      %c0_12 = arith.constant 0 : index
      %c0_13 = arith.constant 0 : index
      %14 = vector.load %arg3[%c0_12, %c0_13] : memref<20x20xf32, #tpu.memory_space<vmem>>, vector<20x20xf32>
      %15 = vector.broadcast %12 : vector<20x1xf32> to vector<20x20xf32>
      %16 = arith.mulf %15, %14 : vector<20x20xf32>
      %cst_14 = arith.constant dense<0.000000e+00> : vector<2x20xf32>
      %17 = tpu.matmul %13, %16, %cst_14 {dimension_numbers = #tpu.dot_dimension_numbers<[1], [0], [0], [1], [0, 0, 1, 1], [], []>} : vector<2x20xf32>, vector<20x20xf32>, vector<2x20xf32> -> vector<2x20xf32>
      %c0_15 = arith.constant 0 : index
      %c0_16 = arith.constant 0 : index
      %18 = vector.load %arg6[%c0_15, %c0_16] : memref<3x20xf32, #tpu.memory_space<vmem>>, vector<1x20xf32>
      %19 = vector.broadcast %18 : vector<1x20xf32> to vector<2x20xf32>
      %20 = arith.addf %17, %19 : vector<2x20xf32>
      %cst_17 = arith.constant 0.000000e+00 : f32
      %21 = vector.broadcast %cst_17 : f32 to vector<2x20xf32>
      %22 = arith.maximumf %20, %21 : vector<2x20xf32>
      %c0_18 = arith.constant 0 : index
      %c0_19 = arith.constant 0 : index
      %23 = vector.load %arg4[%c0_18, %c0_19] : memref<20x20xf32, #tpu.memory_space<vmem>>, vector<20x20xf32>
      %cst_20 = arith.constant dense<0.000000e+00> : vector<2x20xf32>
      %24 = tpu.matmul %22, %23, %cst_20 {dimension_numbers = #tpu.dot_dimension_numbers<[1], [0], [0], [1], [0, 0, 1, 1], [], []>} : vector<2x20xf32>, vector<20x20xf32>, vector<2x20xf32> -> vector<2x20xf32>
      %c1 = arith.constant 1 : index
      %c0_21 = arith.constant 0 : index
      %25 = vector.load %arg6[%c1, %c0_21] : memref<3x20xf32, #tpu.memory_space<vmem>>, vector<1x20xf32>
      %26 = vector.broadcast %25 : vector<1x20xf32> to vector<2x20xf32>
      %27 = arith.addf %24, %26 : vector<2x20xf32>
      %cst_22 = arith.constant 0.000000e+00 : f32
      %28 = vector.broadcast %cst_22 : f32 to vector<2x20xf32>
      %29 = arith.maximumf %27, %28 : vector<2x20xf32>
      %c0_23 = arith.constant 0 : index
      %c0_24 = arith.constant 0 : index
      %30 = vector.load %arg5[%c0_23, %c0_24] : memref<20x10xf32, #tpu.memory_space<vmem>>, vector<20x10xf32>
      %cst_25 = arith.constant dense<0.000000e+00> : vector<2x10xf32>
      %31 = tpu.matmul %29, %30, %cst_25 {dimension_numbers = #tpu.dot_dimension_numbers<[1], [0], [0], [1], [0, 0, 1, 1], [], []>} : vector<2x20xf32>, vector<20x10xf32>, vector<2x10xf32> -> vector<2x10xf32>
      %c2 = arith.constant 2 : index
      %c0_26 = arith.constant 0 : index
      %32 = vector.load %arg6[%c2, %c0_26] : memref<3x20xf32, #tpu.memory_space<vmem>>, vector<1x10xf32>
      %33 = vector.broadcast %32 : vector<1x10xf32> to vector<2x10xf32>
      %34 = arith.addf %31, %33 : vector<2x10xf32>
      %c0_27 = arith.constant 0 : index
      %c0_28 = arith.constant 0 : index
      %35 = vector.load %arg7[%c0_27, %c0_28] : memref<2x10xf32, #tpu.memory_space<vmem>>, vector<2x10xf32>
      tpu.vector_store %arg7[%c0_27, %c0_28], %34 {strides = array<i32>} : memref<2x10xf32, #tpu.memory_space<vmem>>, vector<2x10xf32>,
    } else {
    }
    return
  }
  func.func @transform_0(%arg0: i32) -> (i32, i32) {
    %c0_i32 = arith.constant 0 : i32
    %c0_i32_0 = arith.constant 0 : i32
    return %c0_i32, %arg0 : i32, i32
  }
  func.func @transform_1(%arg0: i32) -> (i32, i32) {
    %c0_i32 = arith.constant 0 : i32
    %c0_i32_0 = arith.constant 0 : i32
    %c0_i32_1 = arith.constant 0 : i32
    return %c0_i32, %c0_i32_0 : i32, i32
  }
  func.func @transform_2(%arg0: i32) -> (i32, i32) {
    %c0_i32 = arith.constant 0 : i32
    %c0_i32_0 = arith.constant 0 : i32
    %c0_i32_1 = arith.constant 0 : i32
    return %c0_i32, %c0_i32_0 : i32, i32
  }
  func.func @transform_3(%arg0: i32) -> (i32, i32) {
    %c0_i32 = arith.constant 0 : i32
    %c0_i32_0 = arith.constant 0 : i32
    %c0_i32_1 = arith.constant 0 : i32
    return %c0_i32, %c0_i32_0 : i32, i32
  }
  func.func @transform_4(%arg0: i32) -> (i32, i32) {
    %c0_i32 = arith.constant 0 : i32
    %c0_i32_0 = arith.constant 0 : i32
    %c0_i32_1 = arith.constant 0 : i32
    return %c0_i32, %c0_i32_0 : i32, i32
  }
  func.func @transform_5(%arg0: i32) -> (i32, i32) {
    %c0_i32 = arith.constant 0 : i32
    %c0_i32_0 = arith.constant 0 : i32
    %c0_i32_1 = arith.constant 0 : i32
    return %c0_i32, %c0_i32_0 : i32, i32
  }
  func.func @transform_6(%arg0: i32) -> (i32, i32) {
    %c0_i32 = arith.constant 0 : i32
    %c0_i32_0 = arith.constant 0 : i32
    %c0_i32_1 = arith.constant 0 : i32
    return %c0_i32, %c0_i32_0 : i32, i32
  }
}

</mosaic_0001>

<llo_original>
// kernel: tpu_custom_call.1
$region0: #{tpu_custom_call.1}
  #allocation0 [shape = 'u32[]', space=smem, size = 0x4, offset = 0x4, fixed_abs, tag = 'smem constant byte address 0x4 - core index']
  #allocation1 [shape = 'u32[72,128]{1,0:T(1,128)}', space=vmem, size = 0x9000, scoped, tag = 'internal scratch']
  #allocation2 [shape = 'f32[20,1]{1,0:T(8,128)}', space=vmem, size = 0x3000, scoped, tag = 'scratch operand']
  %s0 = inlined_call_operand.hbm [shape: f32[20,256], index: 0, kind: input, shape index: {}]
  %s1 = inlined_call_operand.vmem [shape: f32[2,20], index: 1, kind: input, shape index: {}]
  %s2 = inlined_call_operand.vmem [shape: f32[20,20], index: 2, kind: input, shape index: {}]
  %s3 = inlined_call_operand.hbm [shape: f32[20,20], index: 3, kind: input, shape index: {}]
  %s4 = inlined_call_operand.vmem [shape: f32[20,10], index: 4, kind: input, shape index: {}]
  %s5 = inlined_call_operand.vmem [shape: f32[3,20], index: 5, kind: input, shape index: {}]
  %s6 = inlined_call_operand.hbm [shape: f32[2,10], index: 6, kind: output, shape index: {}]
  %s7 = sld [smem:[#allocation0]]
  $region50: #{tpu_custom_call.1} parent=0
    _
  %s9 = ssub.s32 1, %s7
  %s10 = scalar_select 0, %s9, %s7
  $region1: #{tpu_custom_call.1} parent=0
    #allocation3 [shape = 'u8[24576]{0}', space=vmem, size = 0x6000, scoped, tag = 'input window, operand 0, single buffered']
    #allocation4 [shape = 's32[1]{0}', space=sflag, size = 0x4, scoped, tag = 'scoped memory for tpu_custom_call.1']
    #allocation5 [shape = 's32[1]{0}', space=sflag, size = 0x4, scoped, tag = 'scoped memory for tpu_custom_call.1']
    #allocation6 [shape = 'u8[12288]{0}', space=vmem, size = 0x3000, scoped, tag = 'input window, operand 3, single buffered']
    #allocation7 [shape = 's32[1]{0}', space=sflag, size = 0x4, scoped, tag = 'scoped memory for tpu_custom_call.1']
    #allocation8 [shape = 'u8[1024]{0}', space=vmem, size = 0x400, scoped, tag = 'output window, operand 0, single buffered']
    %11 = vsyncpa [#allocation4], 0
    %12 = vsyncpa [#allocation7], 0
    %13 = vsyncpa [#allocation5], 0
    // Predicated region
    $region2: #{tpu_custom_call.1} parent=1 // pred_check
      _
    $region3: #{tpu_custom_call.1} parent=1 // pred_check_branch
      %15 = sbr.rel (0) target = $region5
    $region4: #{tpu_custom_call.1} parent=1 // pred_region
      %17 = vsyncadd [#allocation4], 0
      %s18 = sshll.u32 %s0, 4
      %s19 = int_to_ptr.hbm [resolvable:$true] %s18
      %s20 = sshll.u32 [#allocation3], 4
      %s21 = int_to_ptr.vmem [resolvable:$true] %s20
      %26 = dma.hbm_to_vmem [thread:$0]  %s19, 768, %s21, [#allocation4], 256, 256, 16
    $region5: #{tpu_custom_call.1} parent=1 // pred_fallthru
      _
    // Predicated region
    $region6: #{tpu_custom_call.1} parent=1 // pred_check
      _
    $region7: #{tpu_custom_call.1} parent=1 // pred_check_branch
      %28 = sbr.rel (0) target = $region9
    $region8: #{tpu_custom_call.1} parent=1 // pred_region
      _
    $region9: #{tpu_custom_call.1} parent=1 // pred_fallthru
      _
    // Predicated region
    $region10: #{tpu_custom_call.1} parent=1 // pred_check
      _
    $region11: #{tpu_custom_call.1} parent=1 // pred_check_branch
      %30 = sbr.rel (0) target = $region13
    $region12: #{tpu_custom_call.1} parent=1 // pred_region
      _
    $region13: #{tpu_custom_call.1} parent=1 // pred_fallthru
      _
    // Predicated region
    $region14: #{tpu_custom_call.1} parent=1 // pred_check
      _
    $region15: #{tpu_custom_call.1} parent=1 // pred_check_branch
      %32 = sbr.rel (0) target = $region17
    $region16: #{tpu_custom_call.1} parent=1 // pred_region
      %34 = vsyncadd [#allocation7], 0
      %s35 = sshll.u32 %s3, 4
      %s36 = int_to_ptr.hbm [resolvable:$true] %s35
      %s37 = sshll.u32 [#allocation6], 4
      %s38 = int_to_ptr.vmem [resolvable:$true] %s37
      %43 = dma.hbm_to_vmem [thread:$0]  %s36, 384, %s38, [#allocation7], 128, 128, 8
    $region17: #{tpu_custom_call.1} parent=1 // pred_fallthru
      _
    // Predicated region
    $region18: #{tpu_custom_call.1} parent=1 // pred_check
      _
    $region19: #{tpu_custom_call.1} parent=1 // pred_check_branch
      %45 = sbr.rel (0) target = $region21
    $region20: #{tpu_custom_call.1} parent=1 // pred_region
      _
    $region21: #{tpu_custom_call.1} parent=1 // pred_fallthru
      _
    // Predicated region
    $region22: #{tpu_custom_call.1} parent=1 // pred_check
      _
    $region23: #{tpu_custom_call.1} parent=1 // pred_check_branch
      %47 = sbr.rel (0) target = $region25
    $region24: #{tpu_custom_call.1} parent=1 // pred_region
      _
    $region25: #{tpu_custom_call.1} parent=1 // pred_fallthru
      _
    // Predicated region
    $region26: #{tpu_custom_call.1} parent=1 // pred_check
      _
    $region27: #{tpu_custom_call.1} parent=1 // pred_check_branch
      %49 = sbr.rel (0) target = $region29
    $region28: #{tpu_custom_call.1} parent=1 // pred_region
      %51 = dma.done [#allocation4], 768
    $region29: #{tpu_custom_call.1} parent=1 // pred_fallthru
      _
    // Predicated region
    $region30: #{tpu_custom_call.1} parent=1 // pred_check
      _
    $region31: #{tpu_custom_call.1} parent=1 // pred_check_branch
      %53 = sbr.rel (0) target = $region33
    $region32: #{tpu_custom_call.1} parent=1 // pred_region
      %55 = dma.done [#allocation7], 384
    $region33: #{tpu_custom_call.1} parent=1 // pred_fallthru
      _
    %p56 = scmp.eq.s32.totalorder 0, 0
    // Predicated region
    $region34: #{tpu_custom_call.1} parent=1 // pred_check
      %p57 = pneg %p56
    $region35: #{tpu_custom_call.1} parent=1 // pred_check_branch
      %59 = sbr.rel (%p57) target = $region37
    $region36: #{tpu_custom_call.1} parent=1 // pred_region
      %vm60 = vcmask 7168
      %61 = vst.msk [vmem:[#allocation2] sm:$0xff] %vm60, 0.0
      %62 = vst.msk [vmem:[#allocation2 + $0x8] sm:$0xff] %vm60, 0.0
      %vm63 = vcmask 3072
      %64 = vst.msk [vmem:[#allocation2 + $0x10] sm:$0xf] %vm63, 0.0
    $region37: #{tpu_custom_call.1} parent=1 // pred_fallthru
      _
    %v65 = vld [vmem:[#allocation3] sm:$0xff]
    %v66 = vld [vmem:[#allocation3 + $0x8] sm:$0xff]
    %v67 = vld [vmem:[#allocation3 + $0x10] sm:$0xff]
    %v68 = vld [vmem:[#allocation3 + $0x18] sm:$0xff]
    %v69 = vld [vmem:[#allocation3 + $0x20] sm:$0xf]
    %v70 = vld [vmem:[#allocation3 + $0x28] sm:$0xf]
    %v71 = vld [vmem:[#allocation2] sm:$0xff]
    %v72 = vld [vmem:[#allocation2 + $0x8] sm:$0xff]
    %v73 = vld [vmem:[#allocation2 + $0x10] sm:$0xf]
    %v74 = vadd.f32 %v65, %v66
    %75 = vadd.xlane.f32.xlu0 %v74
    %v76 = vpop.xlane.xlu0 %75
    %v77 = vadd.f32 %v67, %v68
    %78 = vadd.xlane.f32.xlu0 %v77
    %v79 = vpop.xlane.xlu0 %78
    %vm80 = vcmask 1043456
    %v81 = vsel %vm80, %v69, 0.0
    %v82 = vsel %vm80, %v70, 0.0
    %v83 = vadd.f32 %v81, %v82
    %84 = vadd.xlane.f32.xlu0 %v83
    %v85 = vpop.xlane.xlu0 %84
    %v86 = vadd.f32 %v71, %v76
    %v87 = vadd.f32 %v72, %v79
    %v88 = vadd.f32 %v73, %v85
    %vm89 = vcmask 7168
    %90 = vst.msk [vmem:[#allocation2] sm:$0xff] %vm89, %v86
    %91 = vst.msk [vmem:[#allocation2 + $0x8] sm:$0xff] %vm89, %v87
    %vm92 = vcmask 3072
    %93 = vst.msk [vmem:[#allocation2 + $0x10] sm:$0xf] %vm92, %v88
    // Predicated region
    $region38: #{tpu_custom_call.1} parent=1 // pred_check
      %p94 = pneg %p56
    $region39: #{tpu_custom_call.1} parent=1 // pred_check_branch
      %96 = sbr.rel (%p94) target = $region41
    $region40: #{tpu_custom_call.1} parent=1 // pred_region
      %v97 = vld [vmem:[#allocation2] sm:$0xff]
      %v98 = vld [vmem:[#allocation2 + $0x8] sm:$0xff]
      %v99 = vld [vmem:[#allocation2 + $0x10] sm:$0xf]
      %v100 = vld [vmem:[%s1] sm:$0x3]
      %v101 = vld [vmem:[%s2] sm:$0xff]
      %v102 = vld [vmem:[%s2 + $0x8] sm:$0xff]
      %v103 = vld [vmem:[%s2 + $0x10] sm:$0xf]
      %105 = vset.pattern.permute.xlu0 0
      %106 = vperm.xlu0 %105, %v97
      %v107 = vpop.permute.xlu0 %106
      %110 = vset.pattern.permute.xlu0 0
      %111 = vperm.xlu0 %110, %v98
      %v112 = vpop.permute.xlu0 %111
      %115 = vset.pattern.permute.xlu0 0
      %116 = vperm.xlu0 %115, %v99
      %v117 = vpop.permute.xlu0 %116
      %v119 = vmul.f32 %v107, %v101
      %v120 = vmul.f32 %v112, %v102
      %v121 = vmul.f32 %v117, %v103
      %v122 = vld [vmem:[%s5] sm:$0x1]
      %v123 = vperm.slane %v122, 0
      %vm124 = vcmask 162816
      %v126 = vsel %vm124, %v100, 0
      %v129 = vsel %vm80, %v121, 0
      %131 = vmatpush.msra.mxu0 0.0
      %132 = vmatpush.msra.mxu0 0.0
      %133 = vmatpush.msra.mxu0 0.0
      %134 = vmatpush.msra.mxu0 0.0
      %135 = vmatpush.msra.mxu0 0.0
      %136 = vmatpush.msra.mxu0 0.0
      %137 = vmatpush.msra.mxu0 0.0
      %138 = vmatpush.msra.mxu0 0.0
      %139 = vmatpush.msra.mxu0 0.0
      %140 = vmatpush.msra.mxu0 0.0
      %141 = vmatpush.msra.mxu0 0.0
      %142 = vmatpush.msra.mxu0 0.0
      %143 = vmatpush.msra.mxu0 0.0
      %144 = vmatpush.msra.mxu0 %v129
      %145 = vmatpush.msra.mxu0 %v120
      %146 = vmatpush.msra.mxu0 %v119
      %147 = vmatmul.f32.gmra.mxu0 %v126
      %v148 = vpop.f32.mrf.mxu0
      %v149 = vadd.f32 %v123, %v148
      %150 = vdwg.mxu0
      %v151 = vmax.f32 %v149, 0.0
      %v152 = vld [vmem:[#allocation6] sm:$0xff]
      %v153 = vld [vmem:[#allocation6 + $0x8] sm:$0xff]
      %v154 = vld [vmem:[#allocation6 + $0x10] sm:$0xf]
      %v155 = vld [vmem:[%s5 + $0x1] sm:$0x1]
      %v156 = vperm.slane %v155, 0
      %v158 = vsel %vm124, %v151, 0
      %v161 = vsel %vm80, %v154, 0
      %163 = vmatpush.msra.mxu0 0.0
      %164 = vmatpush.msra.mxu0 0.0
      %165 = vmatpush.msra.mxu0 0.0
      %166 = vmatpush.msra.mxu0 0.0
      %167 = vmatpush.msra.mxu0 0.0
      %168 = vmatpush.msra.mxu0 0.0
      %169 = vmatpush.msra.mxu0 0.0
      %170 = vmatpush.msra.mxu0 0.0
      %171 = vmatpush.msra.mxu0 0.0
      %172 = vmatpush.msra.mxu0 0.0
      %173 = vmatpush.msra.mxu0 0.0
      %174 = vmatpush.msra.mxu0 0.0
      %175 = vmatpush.msra.mxu0 0.0
      %176 = vmatpush.msra.mxu0 %v161
      %177 = vmatpush.msra.mxu0 %v153
      %178 = vmatpush.msra.mxu0 %v152
      %179 = vmatmul.f32.gmra.mxu0 %v158
      %v180 = vpop.f32.mrf.mxu0
      %v181 = vadd.f32 %v156, %v180
      %182 = vdwg.mxu0
      %v183 = vmax.f32 %v181, 0.0
      %v184 = vld [vmem:[%s4] sm:$0xff]
      %v185 = vld [vmem:[%s4 + $0x8] sm:$0xff]
      %v186 = vld [vmem:[%s4 + $0x10] sm:$0xf]
      %v187 = vld [vmem:[%s5 + $0x2] sm:$0x1]
      %v188 = vperm.slane %v187, 0
      %v190 = vsel %vm124, %v183, 0
      %v193 = vsel %vm80, %v186, 0
      %195 = vmatpush.msra.mxu0 0.0
      %196 = vmatpush.msra.mxu0 0.0
      %197 = vmatpush.msra.mxu0 0.0
      %198 = vmatpush.msra.mxu0 0.0
      %199 = vmatpush.msra.mxu0 0.0
      %200 = vmatpush.msra.mxu0 0.0
      %201 = vmatpush.msra.mxu0 0.0
      %202 = vmatpush.msra.mxu0 0.0
      %203 = vmatpush.msra.mxu0 0.0
      %204 = vmatpush.msra.mxu0 0.0
      %205 = vmatpush.msra.mxu0 0.0
      %206 = vmatpush.msra.mxu0 0.0
      %207 = vmatpush.msra.mxu0 0.0
      %208 = vmatpush.msra.mxu0 %v193
      %209 = vmatpush.msra.mxu0 %v185
      %210 = vmatpush.msra.mxu0 %v184
      %211 = vmatmul.f32.gmra.mxu0 %v190
      %v212 = vpop.f32.mrf.mxu0
      %v213 = vadd.f32 %v188, %v212
      %214 = vdwg.mxu0
      %vm215 = vcmask 74752
      %216 = vst.msk [vmem:[#allocation8] sm:$0x3] %vm215, %v213
    $region41: #{tpu_custom_call.1} parent=1 // pred_fallthru
      _
    // Predicated region
    $region42: #{tpu_custom_call.1} parent=1 // pred_check
      _
    $region43: #{tpu_custom_call.1} parent=1 // pred_check_branch
      %218 = sbr.rel (0) target = $region45
    $region44: #{tpu_custom_call.1} parent=1 // pred_region
      %220 = vsyncadd [#allocation5], 0
      %s222 = sshll.u32 [#allocation8], 4
      %s223 = int_to_ptr.vmem [resolvable:$true] %s222
      %s224 = sshll.u32 %s6, 4
      %s225 = int_to_ptr.hbm [resolvable:$true] %s224
      %227 = dma.vmem_to_hbm [thread:$0]  %s223, 32, %s225, [#allocation5]
    $region45: #{tpu_custom_call.1} parent=1 // pred_fallthru
      _
    // Predicated region
    $region46: #{tpu_custom_call.1} parent=1 // pred_check
      _
    $region47: #{tpu_custom_call.1} parent=1 // pred_check_branch
      %229 = sbr.rel (0) target = $region49
    $region48: #{tpu_custom_call.1} parent=1 // pred_region
      %231 = dma.done [#allocation5], 32
    $region49: #{tpu_custom_call.1} parent=1 // pred_fallthru
      _
    %232 = vsyncpa [#allocation4], 1
    %233 = vsyncpa [#allocation7], 1
    %234 = vsyncpa [#allocation5], 1

</llo_original>
